<compile_context>
chip_gen: v7x
topology: tpu7x:2x2x1
jax: 0.10.0
libtpu: 0.0.40
codegen_flags: <defaults>
</compile_context>

<pallas_src>
import jax
import jax.numpy as jnp
from jax.experimental import pallas as pl
from jax.experimental.pallas import tpu as pltpu


def mlp_kernel(x_ref, w1_ref, b1_ref, w2_ref, b2_ref, o_ref):
    """fc2(sigmoid(fc1(x))) on one batch tile; all operands VMEM-resident."""
    x = x_ref[...]
    # fc1: (TB, Din) @ (Din, H) -> (TB, H).  w1 is already (K, N) so the MXU
    # consumes it directly (no per-step transpose in the loop body).
    z1 = jnp.dot(x, w1_ref[...], preferred_element_type=jnp.float32)
    z1 = z1 + b1_ref[...]                      # (1, H) broadcasts over rows
    # sigmoid(z) == 0.5 * (tanh(z/2) + 1): one EUP op per vreg, exact numerics.
    h = 0.5 * (jnp.tanh(0.5 * z1) + 1.0)
    # fc2: (TB, H) @ (H, Dout) -> (TB, Dout)
    z2 = jnp.dot(h, w2_ref[...], preferred_element_type=jnp.float32)
    # NOTE: Dout=16 < 128 makes this a masked store; packing 8 rows into 128
    # lanes was evaluated but skipped (relayout cost vs masked-store cost is
    # a wash without on-hardware measurement — see header).
    o_ref[...] = (z2 + b2_ref[...]).astype(o_ref.dtype)


def _cost_estimate(B, Din, H, Dout):
    return pl.CostEstimate(
        flops=2 * B * (Din * H + H * Dout),
        transcendentals=B * H,  # one tanh per hidden activation
        bytes_accessed=4 * (B * Din + Din * H + H + H * Dout + Dout + B * Dout),
    )


def orig_net_forward(x, w1, b1, w2, b2, *, batch_tile=8192, core_parallel=False):
    """Forward pass of orig_Net: fc2(sigmoid(fc1(x))).

    x  : (B, Din)    f32
    w1 : (Din, H)    f32  (pre-transposed once at init time)
    b1 : (1, H)      f32
    w2 : (H, Dout)   f32  (pre-transposed once at init time)
    b2 : (1, Dout)   f32
    core_parallel : use pltpu.CORE_PARALLEL on the batch grid axis (v7x,
                    2 TensorCores).  Off by default for portability.
    """
    B, Din = x.shape
    H = w1.shape[1]
    Dout = w2.shape[1]
    ce = _cost_estimate(B, Din, H, Dout)

    if B <= batch_tile:
        # Whole problem fits VMEM trivially on v5e/v6e/v7x: single no-grid
        # invocation, no per-step pipeline overhead.
        return pl.pallas_call(
            mlp_kernel,
            out_shape=jax.ShapeDtypeStruct((B, Dout), jnp.float32),
            in_specs=[pl.BlockSpec(memory_space=pltpu.MemorySpace.VMEM)] * 5,
            out_specs=pl.BlockSpec(memory_space=pltpu.MemorySpace.VMEM),
            cost_estimate=ce,
        )(x, w1, b1, w2, b2)

    # Large batch: tile only the batch axis; weights/biases stay resident
    # (their index_map always returns block (0, 0)).  VMEM footprint at the
    # default tb=8192: 2 x 1 MiB (x) + 2 x 0.5 MiB (out) + ~0.02 MiB weights,
    # well under v7x's 32 MiB default scoped limit, so no vmem_limit_bytes
    # override is needed.
    assert batch_tile % 8 == 0, "batch tile must respect sublane granularity"
    tb = batch_tile
    grid = (pl.cdiv(B, tb),)
    batch_sem = pltpu.CORE_PARALLEL if core_parallel else "parallel"
    return pl.pallas_call(
        mlp_kernel,
        out_shape=jax.ShapeDtypeStruct((B, Dout), jnp.float32),
        grid=grid,
        in_specs=[
            pl.BlockSpec((tb, Din), lambda i: (i, 0)),     # streamed x tiles
            pl.BlockSpec((Din, H), lambda i: (0, 0)),      # resident fc1 weight
            pl.BlockSpec((1, H), lambda i: (0, 0)),        # resident fc1 bias
            pl.BlockSpec((H, Dout), lambda i: (0, 0)),     # resident fc2 weight
            pl.BlockSpec((1, Dout), lambda i: (0, 0)),     # resident fc2 bias
        ],
        out_specs=pl.BlockSpec((tb, Dout), lambda i: (i, 0)),
        compiler_params=pltpu.CompilerParams(
            dimension_semantics=(batch_sem,),
        ),
        cost_estimate=ce,
    )(x, w1, b1, w2, b2)


def init_params(key, input_dim, hid_size, output_dim):
    """PyTorch nn.Linear default init, stored once in kernel-friendly form:
    weights transposed ONCE here to (in, out) layout, biases reshaped to 2-D.
    No per-call wrapper transposes/reshapes."""
    kw1, kb1, kw2, kb2 = jax.random.split(key, 4)
    lim1 = 1.0 / jnp.sqrt(input_dim)
    lim2 = 1.0 / jnp.sqrt(hid_size)
    # Draw in PyTorch's (out, in) layout for init parity, then transpose once.
    w1 = jax.random.uniform(kw1, (hid_size, input_dim), jnp.float32, -lim1, lim1)
    b1 = jax.random.uniform(kb1, (hid_size,), jnp.float32, -lim1, lim1)
    w2 = jax.random.uniform(kw2, (output_dim, hid_size), jnp.float32, -lim2, lim2)
    b2 = jax.random.uniform(kb2, (output_dim,), jnp.float32, -lim2, lim2)
    return (jnp.asarray(w1.T), b1.reshape(1, hid_size),
            jnp.asarray(w2.T), b2.reshape(1, output_dim))


def reference_forward(x, w1, b1, w2, b2):
    hp = jax.lax.Precision.HIGHEST
    h = jax.nn.sigmoid(jnp.dot(x, w1, precision=hp) + b1)
    return jnp.dot(h, w2, precision=hp) + b2


if __name__ == "__main__":
    input_dim, hid_size, output_dim = 32, 64, 16

    key = jax.random.PRNGKey(0)
    kx_small, kx_big, kparams = jax.random.split(key, 3)
    w1, b1, w2, b2 = init_params(kparams, input_dim, hid_size, output_dim)

    # --- small batch: single no-grid VMEM-resident invocation ---
    batch = 8
    x = jax.random.normal(kx_small, (batch, input_dim), dtype=jnp.float32)
    out = jax.block_until_ready(orig_net_forward(x, w1, b1, w2, b2))
    ref = reference_forward(x, w1, b1, w2, b2)
    assert out.shape == (batch, output_dim)
    # tanh-based sigmoid restores near-exact numerics -> tight tolerance
    assert jnp.allclose(out, ref, atol=1e-4, rtol=1e-4), "small-batch mismatch"

    # --- larger batch with a deliberately small tile to exercise the
    #     batch-tiled, resident-weight grid path (production default is 8192) ---
    big_batch, tile = 256, 64
    xb = jax.random.normal(kx_big, (big_batch, input_dim), dtype=jnp.float32)
    outb = jax.block_until_ready(
        orig_net_forward(xb, w1, b1, w2, b2, batch_tile=tile))
    refb = reference_forward(xb, w1, b1, w2, b2)
    assert outb.shape == (big_batch, output_dim)
    assert jnp.allclose(outb, refb, atol=1e-4, rtol=1e-4), "tiled-batch mismatch"

    print("KERNEL_OK")
</pallas_src>

<mosaic_0001>
module attributes {stable_mosaic.version = 11 : i64} {
  func.func @mlp_kernel(%arg0: memref<8x32xf32, #tpu.memory_space<vmem>>, %arg1: memref<32x64xf32, #tpu.memory_space<vmem>>, %arg2: memref<1x64xf32, #tpu.memory_space<vmem>>, %arg3: memref<64x16xf32, #tpu.memory_space<vmem>>, %arg4: memref<1x16xf32, #tpu.memory_space<vmem>>, %arg5: memref<8x16xf32, #tpu.memory_space<vmem>>) attributes {dimension_semantics = [], scalar_prefetch = 0 : i64, scratch_operands = 0 : i64, tpu.core_type = #tpu.core_type<tc>} {
    %c0 = arith.constant 0 : index
    %c0_0 = arith.constant 0 : index
    %0 = vector.load %arg0[%c0, %c0_0] : memref<8x32xf32, #tpu.memory_space<vmem>>, vector<8x32xf32>
    %c0_1 = arith.constant 0 : index
    %c0_2 = arith.constant 0 : index
    %1 = vector.load %arg1[%c0_1, %c0_2] : memref<32x64xf32, #tpu.memory_space<vmem>>, vector<32x64xf32>
    %cst = arith.constant dense<0.000000e+00> : vector<8x64xf32>
    %2 = tpu.matmul %0, %1, %cst {dimension_numbers = #tpu.dot_dimension_numbers<[1], [0], [0], [1], [0, 0, 1, 1], [], []>} : vector<8x32xf32>, vector<32x64xf32>, vector<8x64xf32> -> vector<8x64xf32>
    %c0_3 = arith.constant 0 : index
    %c0_4 = arith.constant 0 : index
    %3 = vector.load %arg2[%c0_3, %c0_4] : memref<1x64xf32, #tpu.memory_space<vmem>>, vector<1x64xf32>
    %4 = vector.broadcast %3 : vector<1x64xf32> to vector<8x64xf32>
    %5 = arith.addf %2, %4 : vector<8x64xf32>
    %cst_5 = arith.constant 5.000000e-01 : f32
    %6 = vector.broadcast %cst_5 : f32 to vector<8x64xf32>
    %7 = arith.mulf %6, %5 : vector<8x64xf32>
    %8 = math.tanh %7 : vector<8x64xf32>
    %cst_6 = arith.constant 1.000000e+00 : f32
    %9 = vector.broadcast %cst_6 : f32 to vector<8x64xf32>
    %10 = arith.addf %8, %9 : vector<8x64xf32>
    %cst_7 = arith.constant 5.000000e-01 : f32
    %11 = vector.broadcast %cst_7 : f32 to vector<8x64xf32>
    %12 = arith.mulf %11, %10 : vector<8x64xf32>
    %c0_8 = arith.constant 0 : index
    %c0_9 = arith.constant 0 : index
    %13 = vector.load %arg3[%c0_8, %c0_9] : memref<64x16xf32, #tpu.memory_space<vmem>>, vector<64x16xf32>
    %cst_10 = arith.constant dense<0.000000e+00> : vector<8x16xf32>
    %14 = tpu.matmul %12, %13, %cst_10 {dimension_numbers = #tpu.dot_dimension_numbers<[1], [0], [0], [1], [0, 0, 1, 1], [], []>} : vector<8x64xf32>, vector<64x16xf32>, vector<8x16xf32> -> vector<8x16xf32>
    %c0_11 = arith.constant 0 : index
    %c0_12 = arith.constant 0 : index
    %15 = vector.load %arg4[%c0_11, %c0_12] : memref<1x16xf32, #tpu.memory_space<vmem>>, vector<1x16xf32>
    %16 = vector.broadcast %15 : vector<1x16xf32> to vector<8x16xf32>
    %17 = arith.addf %14, %16 : vector<8x16xf32>
    %c0_13 = arith.constant 0 : index
    %c0_14 = arith.constant 0 : index
    %18 = vector.load %arg5[%c0_13, %c0_14] : memref<8x16xf32, #tpu.memory_space<vmem>>, vector<8x16xf32>
    tpu.vector_store %arg5[%c0_13, %c0_14], %17 {strides = array<i32>} : memref<8x16xf32, #tpu.memory_space<vmem>>, vector<8x16xf32>,
    return
  }
}

</mosaic_0001>

<llo_original>
// kernel: tpu_custom_call.1
$region0: #{tpu_custom_call.1}
  #allocation0 [shape = 'u32[]', space=smem, size = 0x4, offset = 0x4, fixed_abs, tag = 'smem constant byte address 0x4 - core index']
  #allocation1 [shape = 'u32[144,128]{1,0:T(1,128)}', space=vmem, size = 0x12000, scoped, tag = 'internal scratch']
  %s0 = inlined_call_operand.vmem [shape: f32[8,32], index: 0, kind: input, shape index: {}]
  %s1 = inlined_call_operand.vmem [shape: f32[32,64], index: 1, kind: input, shape index: {}]
  %s2 = inlined_call_operand.vmem [shape: f32[1,64], index: 2, kind: input, shape index: {}]
  %s3 = inlined_call_operand.vmem [shape: f32[64,16], index: 3, kind: input, shape index: {}]
  %s4 = inlined_call_operand.vmem [shape: f32[1,16], index: 4, kind: input, shape index: {}]
  %s5 = inlined_call_operand.hbm [shape: f32[8,16], index: 5, kind: output, shape index: {}]
  %s6 = sld [smem:[#allocation0]]
  $region30: #{tpu_custom_call.1} parent=0
    _
  %s8 = ssub.s32 1, %s6
  %s9 = scalar_select 0, %s8, %s6
  $region1: #{tpu_custom_call.1} parent=0
    #allocation2 [shape = 'u8[4096]{0}', space=vmem, size = 0x1000, scoped, tag = 'output window, operand 0, single buffered']
    #allocation3 [shape = 's32[1]{0}', space=sflag, size = 0x4, scoped, tag = 'scoped memory for tpu_custom_call.1']
    %10 = vsyncpa [#allocation3], 0
    // Predicated region
    $region2: #{tpu_custom_call.1} parent=1 // pred_check
      _
    $region3: #{tpu_custom_call.1} parent=1 // pred_check_branch
      %12 = sbr.rel (0) target = $region5
    $region4: #{tpu_custom_call.1} parent=1 // pred_region
      _
    $region5: #{tpu_custom_call.1} parent=1 // pred_fallthru
      _
    // Predicated region
    $region6: #{tpu_custom_call.1} parent=1 // pred_check
      _
    $region7: #{tpu_custom_call.1} parent=1 // pred_check_branch
      %14 = sbr.rel (0) target = $region9
    $region8: #{tpu_custom_call.1} parent=1 // pred_region
      _
    $region9: #{tpu_custom_call.1} parent=1 // pred_fallthru
      _
    // Predicated region
    $region10: #{tpu_custom_call.1} parent=1 // pred_check
      _
    $region11: #{tpu_custom_call.1} parent=1 // pred_check_branch
      %16 = sbr.rel (0) target = $region13
    $region12: #{tpu_custom_call.1} parent=1 // pred_region
      _
    $region13: #{tpu_custom_call.1} parent=1 // pred_fallthru
      _
    // Predicated region
    $region14: #{tpu_custom_call.1} parent=1 // pred_check
      _
    $region15: #{tpu_custom_call.1} parent=1 // pred_check_branch
      %18 = sbr.rel (0) target = $region17
    $region16: #{tpu_custom_call.1} parent=1 // pred_region
      _
    $region17: #{tpu_custom_call.1} parent=1 // pred_fallthru
      _
    // Predicated region
    $region18: #{tpu_custom_call.1} parent=1 // pred_check
      _
    $region19: #{tpu_custom_call.1} parent=1 // pred_check_branch
      %20 = sbr.rel (0) target = $region21
    $region20: #{tpu_custom_call.1} parent=1 // pred_region
      _
    $region21: #{tpu_custom_call.1} parent=1 // pred_fallthru
      _
    %v21 = vld [vmem:[%s0] sm:$0xff]
    %v22 = vld [vmem:[%s1] sm:$0xff]
    %v23 = vld [vmem:[%s1 + $0x8] sm:$0xff]
    %v24 = vld [vmem:[%s1 + $0x10] sm:$0xff]
    %v25 = vld [vmem:[%s1 + $0x18] sm:$0xff]
    %v26 = vld [vmem:[%s2] sm:$0x1]
    %v28 = vlaneseq
    %v29 = vshrl.u32 %v28, 7
    %v30 = vsub.s32 0, %v29
    %v31 = vrot.slane %v26, %v30
    %vm33 = vcmask 261120
    %v35 = vsel %vm33, %v21, 0
    %37 = vmatprep.subr.mxu0 0.0
    %38 = vmatpush1.msra.mxu0 %v22
    %39 = vmatprep.subr.mxu0 0.0
    %40 = vmatpush1.msra.mxu0 %v23
    %41 = vmatprep.subr.mxu0 0.0
    %42 = vmatpush1.msra.mxu0 %v24
    %43 = vmatprep.subr.mxu0 0.0
    %44 = vmatpush1.msra.mxu0 %v25
    %45 = vmatprep.subr.mxu0 0.0
    %46 = vmatpush1.msra.mxu0 0.0
    %47 = vmatprep.subr.mxu0 0.0
    %48 = vmatpush1.msra.mxu0 0.0
    %49 = vmatprep.subr.mxu0 0.0
    %50 = vmatpush1.msra.mxu0 0.0
    %51 = vmatprep.subr.mxu0 0.0
    %52 = vmatpush1.msra.mxu0 0.0
    %53 = vmatprep.subr.mxu0 0.0
    %54 = vmatpush1.msra.mxu0 0.0
    %55 = vmatprep.subr.mxu0 0.0
    %56 = vmatpush1.msra.mxu0 0.0
    %57 = vmatprep.subr.mxu0 0.0
    %58 = vmatpush1.msra.mxu0 0.0
    %59 = vmatprep.subr.mxu0 0.0
    %60 = vmatpush1.msra.mxu0 0.0
    %61 = vmatprep.subr.mxu0 0.0
    %62 = vmatpush1.msra.mxu0 0.0
    %63 = vmatprep.subr.mxu0 0.0
    %64 = vmatpush1.msra.mxu0 0.0
    %65 = vmatprep.subr.mxu0 0.0
    %66 = vmatpush1.msra.mxu0 0.0
    %67 = vmatprep.subr.mxu0 0.0
    %68 = vmatpush1.msra.mxu0 0.0
    %69 = vmatprep.subr.mxu0 0.0
    %70 = vmatpush1.msra.mxu0 0.0
    %71 = vmatprep.subr.mxu0 0.0
    %72 = vmatpush1.msra.mxu0 0.0
    %73 = vmatprep.subr.mxu0 0.0
    %74 = vmatpush1.msra.mxu0 0.0
    %75 = vmatprep.subr.mxu0 0.0
    %76 = vmatpush1.msra.mxu0 0.0
    %77 = vmatprep.subr.mxu0 0.0
    %78 = vmatpush1.msra.mxu0 0.0
    %79 = vmatprep.subr.mxu0 0.0
    %80 = vmatpush1.msra.mxu0 0.0
    %81 = vmatprep.subr.mxu0 0.0
    %82 = vmatpush1.msra.mxu0 0.0
    %83 = vmatprep.subr.mxu0 0.0
    %84 = vmatpush1.msra.mxu0 0.0
    %85 = vmatprep.subr.mxu0 0.0
    %86 = vmatpush1.msra.mxu0 0.0
    %87 = vmatprep.subr.mxu0 0.0
    %88 = vmatpush1.msra.mxu0 0.0
    %89 = vmatprep.subr.mxu0 0.0
    %90 = vmatpush1.msra.mxu0 0.0
    %91 = vmatprep.subr.mxu0 0.0
    %92 = vmatpush1.msra.mxu0 0.0
    %93 = vmatprep.subr.mxu0 0.0
    %94 = vmatpush1.msra.mxu0 0.0
    %95 = vmatprep.subr.mxu0 0.0
    %96 = vmatpush1.msra.mxu0 0.0
    %97 = vmatprep.subr.mxu0 0.0
    %98 = vmatpush1.msra.mxu0 0.0
    %99 = vmatprep.subr.mxu0 0.0
    %100 = vmatpush1.msra.mxu0 0.0
    %101 = vmatprep.mubr.f32.mxu0 0.0
    %102 = vmatmul.mubr.f32.gmra.mrb[0].mxu0 %v35
    %v103 = vpop.f32.mrb[0].mxu0
    %v104 = vadd.f32 %v31, %v103
    %v105 = vpop.f32.mrb[0].mxu0
    %106 = vdwg.mxu0
    %v107 = vmul.f32 %v104, 0.5
    %v108 = vtanh.pop %v107
    %v109 = vadd.f32 %v108, 1.0
    %v110 = vmul.f32 %v109, 0.5
    %v111 = vld [vmem:[%s3] sm:$0xff]
    %v112 = vld [vmem:[%s3 + $0x8] sm:$0xff]
    %v113 = vld [vmem:[%s3 + $0x10] sm:$0xff]
    %v114 = vld [vmem:[%s3 + $0x18] sm:$0xff]
    %v115 = vld [vmem:[%s3 + $0x20] sm:$0xff]
    %v116 = vld [vmem:[%s3 + $0x28] sm:$0xff]
    %v117 = vld [vmem:[%s3 + $0x30] sm:$0xff]
    %v118 = vld [vmem:[%s3 + $0x38] sm:$0xff]
    %v119 = vld [vmem:[%s4] sm:$0x1]
    %v121 = vlaneseq
    %v122 = vshrl.u32 %v121, 7
    %v123 = vsub.s32 0, %v122
    %v124 = vrot.slane %v119, %v123
    %vm126 = vcmask 523264
    %v128 = vsel %vm126, %v110, 0
    %130 = vmatprep.subr.mxu0 0.0
    %131 = vmatpush1.msra.mxu0 %v111
    %132 = vmatprep.subr.mxu0 0.0
    %133 = vmatpush1.msra.mxu0 %v112
    %134 = vmatprep.subr.mxu0 0.0
    %135 = vmatpush1.msra.mxu0 %v113
    %136 = vmatprep.subr.mxu0 0.0
    %137 = vmatpush1.msra.mxu0 %v114
    %138 = vmatprep.subr.mxu0 0.0
    %139 = vmatpush1.msra.mxu0 %v115
    %140 = vmatprep.subr.mxu0 0.0
    %141 = vmatpush1.msra.mxu0 %v116
    %142 = vmatprep.subr.mxu0 0.0
    %143 = vmatpush1.msra.mxu0 %v117
    %144 = vmatprep.subr.mxu0 0.0
    %145 = vmatpush1.msra.mxu0 %v118
    %146 = vmatprep.subr.mxu0 0.0
    %147 = vmatpush1.msra.mxu0 0.0
    %148 = vmatprep.subr.mxu0 0.0
    %149 = vmatpush1.msra.mxu0 0.0
    %150 = vmatprep.subr.mxu0 0.0
    %151 = vmatpush1.msra.mxu0 0.0
    %152 = vmatprep.subr.mxu0 0.0
    %153 = vmatpush1.msra.mxu0 0.0
    %154 = vmatprep.subr.mxu0 0.0
    %155 = vmatpush1.msra.mxu0 0.0
    %156 = vmatprep.subr.mxu0 0.0
    %157 = vmatpush1.msra.mxu0 0.0
    %158 = vmatprep.subr.mxu0 0.0
    %159 = vmatpush1.msra.mxu0 0.0
    %160 = vmatprep.subr.mxu0 0.0
    %161 = vmatpush1.msra.mxu0 0.0
    %162 = vmatprep.subr.mxu0 0.0
    %163 = vmatpush1.msra.mxu0 0.0
    %164 = vmatprep.subr.mxu0 0.0
    %165 = vmatpush1.msra.mxu0 0.0
    %166 = vmatprep.subr.mxu0 0.0
    %167 = vmatpush1.msra.mxu0 0.0
    %168 = vmatprep.subr.mxu0 0.0
    %169 = vmatpush1.msra.mxu0 0.0
    %170 = vmatprep.subr.mxu0 0.0
    %171 = vmatpush1.msra.mxu0 0.0
    %172 = vmatprep.subr.mxu0 0.0
    %173 = vmatpush1.msra.mxu0 0.0
    %174 = vmatprep.subr.mxu0 0.0
    %175 = vmatpush1.msra.mxu0 0.0
    %176 = vmatprep.subr.mxu0 0.0
    %177 = vmatpush1.msra.mxu0 0.0
    %178 = vmatprep.subr.mxu0 0.0
    %179 = vmatpush1.msra.mxu0 0.0
    %180 = vmatprep.subr.mxu0 0.0
    %181 = vmatpush1.msra.mxu0 0.0
    %182 = vmatprep.subr.mxu0 0.0
    %183 = vmatpush1.msra.mxu0 0.0
    %184 = vmatprep.subr.mxu0 0.0
    %185 = vmatpush1.msra.mxu0 0.0
    %186 = vmatprep.subr.mxu0 0.0
    %187 = vmatpush1.msra.mxu0 0.0
    %188 = vmatprep.subr.mxu0 0.0
    %189 = vmatpush1.msra.mxu0 0.0
    %190 = vmatprep.subr.mxu0 0.0
    %191 = vmatpush1.msra.mxu0 0.0
    %192 = vmatprep.subr.mxu0 0.0
    %193 = vmatpush1.msra.mxu0 0.0
    %194 = vmatprep.mubr.f32.mxu0 0.0
    %195 = vmatmul.mubr.f32.gmra.mrb[0].mxu0 %v128
    %v196 = vpop.f32.mrb[0].mxu0
    %v197 = vadd.f32 %v124, %v196
    %v198 = vpop.f32.mrb[0].mxu0
    %199 = vdwg.mxu0
    %vm200 = vcmask 130048
    %201 = vst.msk [vmem:[#allocation2] sm:$0xff] %vm200, %v197
    // Predicated region
    $region22: #{tpu_custom_call.1} parent=1 // pred_check
      _
    $region23: #{tpu_custom_call.1} parent=1 // pred_check_branch
      %203 = sbr.rel (0) target = $region25
    $region24: #{tpu_custom_call.1} parent=1 // pred_region
      %s205 = ssub.s32 128, 128
      %206 = vsyncadd [#allocation3], %s205
      %s208 = sshll.u32 [#allocation2], 4
      %s209 = int_to_ptr.vmem [resolvable:$true] %s208
      %211 = dma.vmem_to_hbm [thread:$0]  %s209, 128, %s5, [#allocation3]
    $region25: #{tpu_custom_call.1} parent=1 // pred_fallthru
      _
    // Predicated region
    $region26: #{tpu_custom_call.1} parent=1 // pred_check
      _
    $region27: #{tpu_custom_call.1} parent=1 // pred_check_branch
      %213 = sbr.rel (0) target = $region29
    $region28: #{tpu_custom_call.1} parent=1 // pred_region
      %214 = dma.done [#allocation3], 128
    $region29: #{tpu_custom_call.1} parent=1 // pred_fallthru
      _
    %215 = vsyncpa [#allocation3], 1

</llo_original>
